<compile_context>
chip_gen: v6e
topology: v6e:2x2x1
jax: 0.10.0
libtpu: 0.0.40
codegen_flags: <defaults>
</compile_context>

<pallas_src>
import functools
from typing import NamedTuple, Optional

import jax
import jax.numpy as jnp
from jax.experimental import pallas as pl
from jax.experimental.pallas import tpu as pltpu

_LANE = 128


# --------------------------------------------------------------------------- #
# Small helpers
# --------------------------------------------------------------------------- #
def _round_up(x, m):
    return ((x + m - 1) // m) * m


def _vmem_capacity_bytes():
    try:
        return int(pltpu.get_tpu_info().vmem_capacity_bytes)
    except Exception:
        return 64 * 1024 * 1024  # v7x worst case; conservative everywhere else


def _pick_tile(padded, cap):
    """Largest tile in {1024,512,256,128} that divides `padded` and is <= cap."""
    for t in (1024, 512, 256, 128):
        if t <= cap and padded % t == 0:
            return t
    return 128


def _block_spec(shape, index_map, buffer_count=2):
    """BlockSpec, optionally requesting a deeper pipeline (guarded)."""
    if buffer_count and buffer_count != 2:
        try:
            return pl.BlockSpec(shape, index_map, pipeline_mode=pl.Buffered(buffer_count))
        except Exception:
            pass
    return pl.BlockSpec(shape, index_map)


def _prep_operand(negL, compute_dtype):
    """Pad -L to a 128-multiple square and cast to the compute dtype."""
    n = negL.shape[0]
    n_p = _round_up(max(n, _LANE), _LANE)
    negL_p = jnp.pad(negL, ((0, n_p - n), (0, n_p - n)))
    if compute_dtype is not None and negL_p.dtype != jnp.dtype(compute_dtype):
        negL_p = negL_p.astype(compute_dtype)
    return negL_p, n_p


def _pad_cast_x(x_slab, n_p, compute_dtype):
    """Pad [n, m] state slab to [n_p, m_p] (128-multiples) and cast."""
    n, m = x_slab.shape
    m_p = _round_up(max(m, _LANE), _LANE)
    x_p = jnp.pad(x_slab, ((0, n_p - n), (0, m_p - m)))
    if compute_dtype is not None and x_p.dtype != jnp.dtype(compute_dtype):
        x_p = x_p.astype(compute_dtype)
    return x_p, m_p


# --------------------------------------------------------------------------- #
# Kernels
# --------------------------------------------------------------------------- #
def _single_block_kernel(negL_ref, x_ref, o_ref, *, scale, apply_scale):
    """Whole problem in one VMEM block: o = (k?) * negL @ x, f32 accumulate."""
    acc = jnp.dot(negL_ref[...], x_ref[...], preferred_element_type=jnp.float32)
    if apply_scale:  # static Python bool -> zero cost when k == 1
        acc = acc * scale
    o_ref[...] = acc.astype(o_ref.dtype)


def _tiled_kernel(negL_ref, x_ref, o_ref, acc_ref, *, t_k, x_resident, scale,
                  apply_scale):
    """Grid (M, K): one (t_m, m_p) output strip per M step, K is the reduction."""
    kk = pl.program_id(1)

    @pl.when(kk == 0)
    def _init():
        acc_ref[...] = jnp.zeros_like(acc_ref)

    if x_resident:
        # x is the full [n_p, m_p] slab, resident in VMEM -> slice the K rows.
        k0 = pl.multiple_of(kk * t_k, t_k)
        x_blk = x_ref[pl.ds(k0, t_k), :]
    else:
        x_blk = x_ref[...]

    acc_ref[...] += jnp.dot(negL_ref[...], x_blk,
                            preferred_element_type=jnp.float32)

    @pl.when(kk == pl.num_programs(1) - 1)
    def _finalize():
        acc = acc_ref[...]
        if apply_scale:
            acc = acc * scale
        o_ref[...] = acc.astype(o_ref.dtype)


# --------------------------------------------------------------------------- #
# Padded matmul driver:  out = (scale?) * negL_p @ x_p
# --------------------------------------------------------------------------- #
def _heat_rhs_matmul_padded(negL_p, x_p, out_dtype, *, scale=1.0,
                            apply_scale=False, force_x_resident=None):
    n_p, n_p2 = negL_p.shape
    assert n_p == n_p2 == x_p.shape[0]
    m_p = x_p.shape[1]

    comp_bytes = negL_p.dtype.itemsize
    x_bytes = x_p.dtype.itemsize
    out_bytes = jnp.dtype(out_dtype).itemsize

    vmem_cap = _vmem_capacity_bytes()
    budget = int(vmem_cap * 0.7)  # headroom for compiler scratch / metadata

    # ---- small-problem fast path: one block, no grid bookkeeping ---------- #
    single_foot = (n_p * n_p * comp_bytes + n_p * m_p * (x_bytes + out_bytes)
                   + n_p * m_p * 4)
    if (force_x_resident is None and n_p <= 512 and m_p <= 1024
            and single_foot <= budget):
        cost = pl.CostEstimate(
            flops=2 * n_p * n_p * m_p,
            transcendentals=0,
            bytes_accessed=n_p * n_p * comp_bytes + n_p * m_p * (x_bytes + out_bytes),
        )
        return pl.pallas_call(
            functools.partial(_single_block_kernel, scale=scale,
                              apply_scale=apply_scale),
            out_shape=jax.ShapeDtypeStruct((n_p, m_p), out_dtype),
            grid=(1,),
            in_specs=[pl.BlockSpec((n_p, n_p), lambda i: (0, 0)),
                      pl.BlockSpec((n_p, m_p), lambda i: (0, 0))],
            out_specs=pl.BlockSpec((n_p, m_p), lambda i: (0, 0)),
            compiler_params=pltpu.CompilerParams(vmem_limit_bytes=budget),
            cost_estimate=cost,
        )(negL_p, x_p)

    # ---- tiled (M, K) path ------------------------------------------------ #
    # v7x: keep >= 2 iterations on the parallel M axis so both TCs get work.
    m_cap = 1024
    if n_p >= 256:
        m_cap = min(m_cap, n_p // 2)
    t_m = _pick_tile(n_p, m_cap)
    t_k = _pick_tile(n_p, 1024)

    def footprint(tm, tk, resident, negl_bufs=2):
        f = negl_bufs * tm * tk * comp_bytes                 # streamed negL tiles
        f += (2 * n_p * m_p if resident else 2 * tk * m_p) * x_bytes
        f += 2 * tm * m_p * out_bytes                        # output strip
        f += tm * m_p * 4                                    # f32 accumulator
        return f

    x_resident = (2 * n_p * m_p * x_bytes) <= budget // 2
    if force_x_resident is not None:
        x_resident = bool(force_x_resident)

    while footprint(t_m, t_k, x_resident) > budget:
        if t_k > 128:
            t_k = _pick_tile(n_p, t_k // 2)
        elif t_m > 128:
            t_m = _pick_tile(n_p, t_m // 2)
        elif x_resident and force_x_resident is None:
            x_resident = False
        else:
            break

    negl_bufs = 3 if footprint(t_m, t_k, x_resident, negl_bufs=3) <= budget else 2

    m_tiles = n_p // t_m
    k_tiles = n_p // t_k
    grid = (m_tiles, k_tiles)

    negL_spec = _block_spec((t_m, t_k), lambda i, kk: (i, kk),
                            buffer_count=negl_bufs)
    if x_resident:
        x_spec = pl.BlockSpec((n_p, m_p), lambda i, kk: (0, 0))   # DMA'd once
    else:
        x_spec = pl.BlockSpec((t_k, m_p), lambda i, kk: (kk, 0))  # per-K strip
    out_spec = pl.BlockSpec((t_m, m_p), lambda i, kk: (i, 0))      # lane-dense

    x_reads = 1 if x_resident else m_tiles
    cost = pl.CostEstimate(
        flops=2 * n_p * n_p * m_p,
        transcendentals=0,
        bytes_accessed=(n_p * n_p * comp_bytes
                        + x_reads * n_p * m_p * x_bytes
                        + n_p * m_p * out_bytes),
    )

    kernel = functools.partial(_tiled_kernel, t_k=t_k, x_resident=x_resident,
                               scale=scale, apply_scale=apply_scale)

    return pl.pallas_call(
        kernel,
        out_shape=jax.ShapeDtypeStruct((n_p, m_p), out_dtype),
        grid_spec=pltpu.PrefetchScalarGridSpec(
            num_scalar_prefetch=0,
            grid=grid,
            in_specs=[negL_spec, x_spec],
            out_specs=out_spec,
            scratch_shapes=[pltpu.VMEM((t_m, m_p), jnp.float32)],
        ),
        compiler_params=pltpu.CompilerParams(
            dimension_semantics=("parallel", "arbitrary"),
            vmem_limit_bytes=budget,
        ),
        cost_estimate=cost,
    )(negL_p, x_p)


# --------------------------------------------------------------------------- #
# Public API
# --------------------------------------------------------------------------- #
class PreparedHeatOperator(NamedTuple):
    """-L, padded / cast / k-folded once; reuse across all ODE RHS evals."""
    negL_p: jax.Array   # [n_p, n_p], compute dtype, already scaled by k
    n: int              # logical number of nodes


def prepare_heat_operator(negL, k=1.0, compute_dtype=jnp.bfloat16):
    """Pad, fold k, and cast -L ONCE (amortized over a whole ODE solve)."""
    n = negL.shape[0]
    assert negL.shape == (n, n)
    op = jnp.asarray(negL, jnp.float32)
    if not (isinstance(k, (int, float)) and float(k) == 1.0):
        op = op * jnp.asarray(k, op.dtype)          # scale in f32, then cast
    op_p, _ = _prep_operand(op, compute_dtype)
    return PreparedHeatOperator(negL_p=op_p, n=n)


def pack_states_to_slab(xs):
    """[S, n, d] -> lane-dense [n, S*d] slab (do this once per solve)."""
    S, n, d = xs.shape
    return jnp.transpose(xs, (1, 0, 2)).reshape(n, S * d)


def unpack_slab_to_states(slab, S, d):
    """[n, S*d] slab -> [S, n, d]."""
    n = slab.shape[0]
    return jnp.transpose(slab.reshape(n, S, d), (1, 0, 2))


def heat_rhs_prepared(prep: PreparedHeatOperator, x_slab):
    """dX/dt = prep.negL_p @ x_slab  (k already folded in). x_slab: [n, m]."""
    n, m = x_slab.shape
    assert n == prep.n
    n_p = prep.negL_p.shape[0]
    x_p, _ = _pad_cast_x(x_slab, n_p, prep.negL_p.dtype)
    out_p = _heat_rhs_matmul_padded(prep.negL_p, x_p, x_slab.dtype,
                                    scale=1.0, apply_scale=False)
    return out_p[:n, :m]


def heat_diffusion_forward(t, negL, x, k=1.0, compute_dtype=jnp.bfloat16):
    """Pallas equivalent of HeatDiffusion.forward(t, x): k * (negL @ x).

    t is unused (autonomous system); negL is the module's self.L = -Laplacian.
    For repeated RHS evaluations prefer prepare_heat_operator + heat_rhs_prepared.
    """
    del t
    n, d = x.shape
    assert negL.shape == (n, n)

    if isinstance(k, (int, float)):
        scale, apply_scale = float(k), float(k) != 1.0     # free at finalize
        negL_eff = negL
    else:                                                  # traced k: fold once
        scale, apply_scale = 1.0, False
        negL_eff = negL * k

    negL_p, n_p = _prep_operand(negL_eff, compute_dtype)
    x_p, _ = _pad_cast_x(x, n_p, compute_dtype)
    out_p = _heat_rhs_matmul_padded(negL_p, x_p, x.dtype,
                                    scale=scale, apply_scale=apply_scale)
    return out_p[:n, :d]


def heat_diffusion_forward_multi(t, negL, xs, k=1.0, compute_dtype=jnp.bfloat16):
    """Fused k * negL @ x for S stacked states in ONE pallas_call.

    xs: [S, n, d]; the S feature blocks are stacked along the lane axis so the
    kernel sees one lane-dense [n, S*d] slab and negL is streamed once.
    """
    del t
    S, n, d = xs.shape
    assert negL.shape == (n, n)
    slab = pack_states_to_slab(xs)
    out_slab = heat_diffusion_forward(0.0, negL, slab, k=k,
                                      compute_dtype=compute_dtype)
    return unpack_slab_to_states(out_slab, S, d)


# --------------------------------------------------------------------------- #
# Demo / self-test
# --------------------------------------------------------------------------- #
if __name__ == "__main__":
    key = jax.random.PRNGKey(0)
    k_adj, k_x, k_adj2, k_x2 = jax.random.split(key, 4)

    def rel_err(a, b):
        a = jnp.asarray(a, jnp.float32)
        b = jnp.asarray(b, jnp.float32)
        return float(jnp.linalg.norm(a - b) / (jnp.linalg.norm(b) + 1e-30))

    def make_negL(rng, n):
        # Graph Laplacian L = D - A from a random symmetric adjacency, as in
        # gen_heat_data; the module stores self.L = -L.
        a = (jax.random.uniform(rng, (n, n)) < 0.3).astype(jnp.float32)
        a = jnp.triu(a, 1)
        a = a + a.T
        L = jnp.diag(jnp.sum(a, axis=1)) - a
        return -L

    # ---- small problem, matching the module's typical call --------------- #
    n, dim, steps = 32, 16, 8
    k_coef = 0.7
    negL = make_negL(k_adj, n)
    xs = jax.random.normal(k_x, (steps, n, dim), dtype=jnp.float32)
    t = jnp.float32(0.0)  # unused (autonomous system)

    ref_multi = k_coef * jnp.einsum("ij,sjd->sid", negL, xs,
                                    precision=jax.lax.Precision.HIGHEST)

    # 1) Fused multi-state path, f32 MXU inputs (single-block fast path).
    out_f32 = jax.block_until_ready(
        heat_diffusion_forward_multi(t, negL, xs, k=k_coef,
                                     compute_dtype=jnp.float32))
    assert out_f32.shape == (steps, n, dim) and out_f32.dtype == xs.dtype
    assert rel_err(out_f32, ref_multi) < 2e-2

    # 2) Default bf16 MXU-input path (f32 accumulation).
    out_bf16 = jax.block_until_ready(
        heat_diffusion_forward_multi(t, negL, xs, k=k_coef))
    assert out_bf16.dtype == xs.dtype
    assert rel_err(out_bf16, ref_multi) < 5e-2

    # 3) Prepared operator + lane-dense slab (the layout an ODE solver keeps).
    prep = prepare_heat_operator(negL, k=k_coef)       # pad/cast/k-fold once
    slab = pack_states_to_slab(xs)                     # [32, 128]
    out_slab = jax.block_until_ready(heat_rhs_prepared(prep, slab))
    out_prep = unpack_slab_to_states(out_slab, steps, dim)
    assert rel_err(out_prep, ref_multi) < 5e-2

    # 4) Single-state forward matching HeatDiffusion.forward(t, x).
    x0 = xs[0]
    out_single = jax.block_until_ready(
        heat_diffusion_forward(t, negL, x0, k=1.0, compute_dtype=jnp.float32))
    ref_single = jnp.dot(negL, x0, precision=jax.lax.Precision.HIGHEST)
    assert out_single.shape == (n, dim) and out_single.dtype == x0.dtype
    assert rel_err(out_single, ref_single) < 2e-2

    # 5) Larger graph to exercise the tiled (M, K) grid path.
    n2, dim2 = 640, 16
    negL2 = make_negL(k_adj2, n2)
    x2 = jax.random.normal(k_x2, (n2, dim2), dtype=jnp.float32)
    ref2 = jnp.dot(negL2, x2, precision=jax.lax.Precision.HIGHEST)

    out2 = jax.block_until_ready(
        heat_diffusion_forward(t, negL2, x2, k=1.0, compute_dtype=jnp.float32))
    assert out2.shape == (n2, dim2)
    assert rel_err(out2, ref2) < 2e-2

    # 5b) Streamed-x fallback variant of the tiled kernel (internal path check).
    negL2_p, n2_p = _prep_operand(negL2, jnp.float32)
    x2_p, _ = _pad_cast_x(x2, n2_p, jnp.float32)
    out2s = jax.block_until_ready(
        _heat_rhs_matmul_padded(negL2_p, x2_p, x2.dtype, scale=1.0,
                                apply_scale=False, force_x_resident=False)
    )[:n2, :dim2]
    assert rel_err(out2s, ref2) < 2e-2

    print("KERNEL_OK")
</pallas_src>

<mosaic_0001>
module attributes {stable_mosaic.version = 11 : i64} {
  func.func @_single_block_kernel(%arg0: i32, %arg1: memref<128x128xf32, #tpu.memory_space<vmem>>, %arg2: memref<128x128xf32, #tpu.memory_space<vmem>>, %arg3: memref<128x128xf32, #tpu.memory_space<vmem>>) attributes {dimension_semantics = [#tpu.dimension_semantics<arbitrary>], iteration_bounds = array<i64: 1>, scalar_prefetch = 0 : i64, scratch_operands = 0 : i64, tpu.core_type = #tpu.core_type<tc>, window_params = [{pipeline_mode = #tpu.pipeline_mode<synchronous>, transform_indices = @transform_0, window_bounds = array<i64: 128, 128>}, {pipeline_mode = #tpu.pipeline_mode<synchronous>, transform_indices = @transform_1, window_bounds = array<i64: 128, 128>}, {pipeline_mode = #tpu.pipeline_mode<synchronous>, transform_indices = @transform_2, window_bounds = array<i64: 128, 128>}]} {
    %c0 = arith.constant 0 : index
    %c0_0 = arith.constant 0 : index
    %0 = vector.load %arg1[%c0, %c0_0] : memref<128x128xf32, #tpu.memory_space<vmem>>, vector<128x128xf32>
    %c0_1 = arith.constant 0 : index
    %c0_2 = arith.constant 0 : index
    %1 = vector.load %arg2[%c0_1, %c0_2] : memref<128x128xf32, #tpu.memory_space<vmem>>, vector<128x128xf32>
    %cst = arith.constant dense<0.000000e+00> : vector<128x128xf32>
    %2 = tpu.matmul %0, %1, %cst {dimension_numbers = #tpu.dot_dimension_numbers<[1], [0], [0], [1], [0, 0, 1, 1], [], []>} : vector<128x128xf32>, vector<128x128xf32>, vector<128x128xf32> -> vector<128x128xf32>
    %cst_3 = arith.constant 0.699999988 : f32
    %3 = vector.broadcast %cst_3 : f32 to vector<128x128xf32>
    %4 = arith.mulf %2, %3 : vector<128x128xf32>
    %c0_4 = arith.constant 0 : index
    %c0_5 = arith.constant 0 : index
    %5 = vector.load %arg3[%c0_4, %c0_5] : memref<128x128xf32, #tpu.memory_space<vmem>>, vector<128x128xf32>
    tpu.vector_store %arg3[%c0_4, %c0_5], %4 {strides = array<i32>} : memref<128x128xf32, #tpu.memory_space<vmem>>, vector<128x128xf32>,
    return
  }
  func.func @transform_0(%arg0: i32) -> (i32, i32) {
    %c0_i32 = arith.constant 0 : i32
    %c0_i32_0 = arith.constant 0 : i32
    %c0_i32_1 = arith.constant 0 : i32
    return %c0_i32, %c0_i32_0 : i32, i32
  }
  func.func @transform_1(%arg0: i32) -> (i32, i32) {
    %c0_i32 = arith.constant 0 : i32
    %c0_i32_0 = arith.constant 0 : i32
    %c0_i32_1 = arith.constant 0 : i32
    return %c0_i32, %c0_i32_0 : i32, i32
  }
  func.func @transform_2(%arg0: i32) -> (i32, i32) {
    %c0_i32 = arith.constant 0 : i32
    %c0_i32_0 = arith.constant 0 : i32
    %c0_i32_1 = arith.constant 0 : i32
    return %c0_i32, %c0_i32_0 : i32, i32
  }
}

</mosaic_0001>

<llo_original>
// kernel: tpu_custom_call.1
$region0: #{tpu_custom_call.1}
  #allocation0 [shape = 'u32[]', space=smem, size = 0x4, offset = 0x4, fixed_abs, tag = 'smem constant byte address 0x4 - core index']
  #allocation1 [shape = 'u32[144,128]{1,0:T(1,128)}', space=vmem, size = 0x12000, scoped, tag = 'internal scratch']
  %s0 = inlined_call_operand.hbm [shape: f32[128,128], index: 0, kind: input, shape index: {}]
  %s1 = inlined_call_operand.hbm [shape: f32[128,128], index: 1, kind: input, shape index: {}]
  %s2 = inlined_call_operand.hbm [shape: f32[128,128], index: 2, kind: output, shape index: {}]
  %s3 = sld [smem:[#allocation0]]
  $region26: #{tpu_custom_call.1} parent=0
    _
  %s5 = ssub.s32 1, %s3
  %s6 = scalar_select 0, %s5, %s3
  $region1: #{tpu_custom_call.1} parent=0
    #allocation2 [shape = 'u8[65536]{0}', space=vmem, size = 0x10000, scoped, tag = 'input window, operand 0, single buffered']
    #allocation3 [shape = 's32[1]{0}', space=sflag, size = 0x4, scoped, tag = 'scoped memory for tpu_custom_call.1']
    #allocation4 [shape = 's32[1]{0}', space=sflag, size = 0x4, scoped, tag = 'scoped memory for tpu_custom_call.1']
    #allocation5 [shape = 'u8[65536]{0}', space=vmem, size = 0x10000, scoped, tag = 'input window, operand 1, single buffered']
    #allocation6 [shape = 's32[1]{0}', space=sflag, size = 0x4, scoped, tag = 'scoped memory for tpu_custom_call.1']
    #allocation7 [shape = 'u8[65536]{0}', space=vmem, size = 0x10000, scoped, tag = 'output window, operand 0, single buffered']
    %7 = vsyncpa [#allocation3], 0
    %8 = vsyncpa [#allocation6], 0
    %9 = vsyncpa [#allocation4], 0
    // Predicated region
    $region2: #{tpu_custom_call.1} parent=1 // pred_check
      _
    $region3: #{tpu_custom_call.1} parent=1 // pred_check_branch
      %11 = sbr.rel (0) target = $region5
    $region4: #{tpu_custom_call.1} parent=1 // pred_region
      %s13 = ssub.s32 2048, 2048
      %14 = vsyncadd [#allocation3], %s13
      %s15 = sshll.u32 [#allocation2], 4
      %s16 = int_to_ptr.vmem [resolvable:$true] %s15
      %21 = dma.hbm_to_vmem [thread:$0]  %s0, 2048, %s16, [#allocation3], 128, 128, 8
    $region5: #{tpu_custom_call.1} parent=1 // pred_fallthru
      _
    // Predicated region
    $region6: #{tpu_custom_call.1} parent=1 // pred_check
      _
    $region7: #{tpu_custom_call.1} parent=1 // pred_check_branch
      %23 = sbr.rel (0) target = $region9
    $region8: #{tpu_custom_call.1} parent=1 // pred_region
      %s25 = ssub.s32 2048, 2048
      %26 = vsyncadd [#allocation6], %s25
      %s27 = sshll.u32 [#allocation5], 4
      %s28 = int_to_ptr.vmem [resolvable:$true] %s27
      %33 = dma.hbm_to_vmem [thread:$0]  %s1, 2048, %s28, [#allocation6], 128, 128, 8
    $region9: #{tpu_custom_call.1} parent=1 // pred_fallthru
      _
    // Predicated region
    $region10: #{tpu_custom_call.1} parent=1 // pred_check
      _
    $region11: #{tpu_custom_call.1} parent=1 // pred_check_branch
      %35 = sbr.rel (0) target = $region13
    $region12: #{tpu_custom_call.1} parent=1 // pred_region
      %36 = dma.done [#allocation3], 2048
    $region13: #{tpu_custom_call.1} parent=1 // pred_fallthru
      _
    // Predicated region
    $region14: #{tpu_custom_call.1} parent=1 // pred_check
      _
    $region15: #{tpu_custom_call.1} parent=1 // pred_check_branch
      %38 = sbr.rel (0) target = $region17
    $region16: #{tpu_custom_call.1} parent=1 // pred_region
      %39 = dma.done [#allocation6], 2048
    $region17: #{tpu_custom_call.1} parent=1 // pred_fallthru
      _
    %v40 = vld [vmem:[#allocation2] sm:$0xff]
    %v41 = vld [vmem:[#allocation2 + $0x8] sm:$0xff]
    %v42 = vld [vmem:[#allocation2 + $0x10] sm:$0xff]
    %v43 = vld [vmem:[#allocation2 + $0x18] sm:$0xff]
    %v44 = vld [vmem:[#allocation2 + $0x20] sm:$0xff]
    %v45 = vld [vmem:[#allocation2 + $0x28] sm:$0xff]
    %v46 = vld [vmem:[#allocation2 + $0x30] sm:$0xff]
    %v47 = vld [vmem:[#allocation2 + $0x38] sm:$0xff]
    %v48 = vld [vmem:[#allocation2 + $0x40] sm:$0xff]
    %v49 = vld [vmem:[#allocation2 + $0x48] sm:$0xff]
    %v50 = vld [vmem:[#allocation2 + $0x50] sm:$0xff]
    %v51 = vld [vmem:[#allocation2 + $0x58] sm:$0xff]
    %v52 = vld [vmem:[#allocation2 + $0x60] sm:$0xff]
    %v53 = vld [vmem:[#allocation2 + $0x68] sm:$0xff]
    %v54 = vld [vmem:[#allocation2 + $0x70] sm:$0xff]
    %v55 = vld [vmem:[#allocation2 + $0x78] sm:$0xff]
    %v56 = vld [vmem:[#allocation5] sm:$0xff]
    %v57 = vld [vmem:[#allocation5 + $0x8] sm:$0xff]
    %v58 = vld [vmem:[#allocation5 + $0x10] sm:$0xff]
    %v59 = vld [vmem:[#allocation5 + $0x18] sm:$0xff]
    %v60 = vld [vmem:[#allocation5 + $0x20] sm:$0xff]
    %v61 = vld [vmem:[#allocation5 + $0x28] sm:$0xff]
    %v62 = vld [vmem:[#allocation5 + $0x30] sm:$0xff]
    %v63 = vld [vmem:[#allocation5 + $0x38] sm:$0xff]
    %v64 = vld [vmem:[#allocation5 + $0x40] sm:$0xff]
    %v65 = vld [vmem:[#allocation5 + $0x48] sm:$0xff]
    %v66 = vld [vmem:[#allocation5 + $0x50] sm:$0xff]
    %v67 = vld [vmem:[#allocation5 + $0x58] sm:$0xff]
    %v68 = vld [vmem:[#allocation5 + $0x60] sm:$0xff]
    %v69 = vld [vmem:[#allocation5 + $0x68] sm:$0xff]
    %v70 = vld [vmem:[#allocation5 + $0x70] sm:$0xff]
    %v71 = vld [vmem:[#allocation5 + $0x78] sm:$0xff]
    %72 = vmatprep.subr.mxu0 0.0
    %73 = vmatpush1.msra.mxu0 %v71
    %74 = vmatprep.subr.mxu0 0.0
    %75 = vmatpush1.msra.mxu0 %v70
    %76 = vmatprep.subr.mxu0 0.0
    %77 = vmatpush1.msra.mxu0 %v69
    %78 = vmatprep.subr.mxu0 0.0
    %79 = vmatpush1.msra.mxu0 %v68
    %80 = vmatprep.subr.mxu0 0.0
    %81 = vmatpush1.msra.mxu0 %v67
    %82 = vmatprep.subr.mxu0 0.0
    %83 = vmatpush1.msra.mxu0 %v66
    %84 = vmatprep.subr.mxu0 0.0
    %85 = vmatpush1.msra.mxu0 %v65
    %86 = vmatprep.subr.mxu0 0.0
    %87 = vmatpush1.msra.mxu0 %v64
    %88 = vmatprep.subr.mxu0 0.0
    %89 = vmatpush1.msra.mxu0 %v63
    %90 = vmatprep.subr.mxu0 0.0
    %91 = vmatpush1.msra.mxu0 %v62
    %92 = vmatprep.subr.mxu0 0.0
    %93 = vmatpush1.msra.mxu0 %v61
    %94 = vmatprep.subr.mxu0 0.0
    %95 = vmatpush1.msra.mxu0 %v60
    %96 = vmatprep.subr.mxu0 0.0
    %97 = vmatpush1.msra.mxu0 %v59
    %98 = vmatprep.subr.mxu0 0.0
    %99 = vmatpush1.msra.mxu0 %v58
    %100 = vmatprep.subr.mxu0 0.0
    %101 = vmatpush1.msra.mxu0 %v57
    %102 = vmatprep.subr.mxu0 0.0
    %103 = vmatpush1.msra.mxu0 %v56
    %104 = vmatprep.subr.mxu0 0.0
    %105 = vmatpush2.msra.mxu0 0.0
    %106 = vmatprep.subr.mxu0 0.0
    %107 = vmatpush2.msra.mxu0 0.0
    %108 = vmatprep.subr.mxu0 0.0
    %109 = vmatpush2.msra.mxu0 0.0
    %110 = vmatprep.subr.mxu0 0.0
    %111 = vmatpush2.msra.mxu0 0.0
    %112 = vmatprep.subr.mxu0 0.0
    %113 = vmatpush2.msra.mxu0 0.0
    %114 = vmatprep.subr.mxu0 0.0
    %115 = vmatpush2.msra.mxu0 0.0
    %116 = vmatprep.subr.mxu0 0.0
    %117 = vmatpush2.msra.mxu0 0.0
    %118 = vmatprep.subr.mxu0 0.0
    %119 = vmatpush2.msra.mxu0 0.0
    %120 = vmatprep.subr.mxu0 0.0
    %121 = vmatpush2.msra.mxu0 0.0
    %122 = vmatprep.subr.mxu0 0.0
    %123 = vmatpush2.msra.mxu0 0.0
    %124 = vmatprep.subr.mxu0 0.0
    %125 = vmatpush2.msra.mxu0 0.0
    %126 = vmatprep.subr.mxu0 0.0
    %127 = vmatpush2.msra.mxu0 0.0
    %128 = vmatprep.subr.mxu0 0.0
    %129 = vmatpush2.msra.mxu0 0.0
    %130 = vmatprep.subr.mxu0 0.0
    %131 = vmatpush2.msra.mxu0 0.0
    %132 = vmatprep.subr.mxu0 0.0
    %133 = vmatpush2.msra.mxu0 0.0
    %134 = vmatprep.subr.mxu0 0.0
    %135 = vmatpush2.msra.mxu0 0.0
    %136 = vmatprep.mubr.f32.mxu0 0.0
    %137 = vmatmul.mubr.f32.gmra.mxu0 %v40
    %v138 = vpop.f32.mrf.mxu0
    %v139 = vadd.f32 0.0, %v138
    %v140 = vpop.f32.mrf.mxu0
    %141 = vmatprep.mubr.f32.mxu0 0.0
    %142 = vmatmul.mubr.f32.gmra.mxu0 %v41
    %v143 = vpop.f32.mrf.mxu0
    %v144 = vadd.f32 0.0, %v143
    %v145 = vpop.f32.mrf.mxu0
    %146 = vmatprep.mubr.f32.mxu0 0.0
    %147 = vmatmul.mubr.f32.gmra.mxu0 %v42
    %v148 = vpop.f32.mrf.mxu0
    %v149 = vadd.f32 0.0, %v148
    %v150 = vpop.f32.mrf.mxu0
    %151 = vmatprep.mubr.f32.mxu0 0.0
    %152 = vmatmul.mubr.f32.gmra.mxu0 %v43
    %v153 = vpop.f32.mrf.mxu0
    %v154 = vadd.f32 0.0, %v153
    %v155 = vpop.f32.mrf.mxu0
    %156 = vmatprep.mubr.f32.mxu0 0.0
    %157 = vmatmul.mubr.f32.gmra.mxu0 %v44
    %v158 = vpop.f32.mrf.mxu0
    %v159 = vadd.f32 0.0, %v158
    %v160 = vpop.f32.mrf.mxu0
    %161 = vmatprep.mubr.f32.mxu0 0.0
    %162 = vmatmul.mubr.f32.gmra.mxu0 %v45
    %v163 = vpop.f32.mrf.mxu0
    %v164 = vadd.f32 0.0, %v163
    %v165 = vpop.f32.mrf.mxu0
    %166 = vmatprep.mubr.f32.mxu0 0.0
    %167 = vmatmul.mubr.f32.gmra.mxu0 %v46
    %v168 = vpop.f32.mrf.mxu0
    %v169 = vadd.f32 0.0, %v168
    %v170 = vpop.f32.mrf.mxu0
    %171 = vmatprep.mubr.f32.mxu0 0.0
    %172 = vmatmul.mubr.f32.gmra.mxu0 %v47
    %v173 = vpop.f32.mrf.mxu0
    %v174 = vadd.f32 0.0, %v173
    %v175 = vpop.f32.mrf.mxu0
    %176 = vmatprep.mubr.f32.mxu0 0.0
    %177 = vmatmul.mubr.f32.gmra.mxu0 %v48
    %v178 = vpop.f32.mrf.mxu0
    %v179 = vadd.f32 0.0, %v178
    %v180 = vpop.f32.mrf.mxu0
    %181 = vmatprep.mubr.f32.mxu0 0.0
    %182 = vmatmul.mubr.f32.gmra.mxu0 %v49
    %v183 = vpop.f32.mrf.mxu0
    %v184 = vadd.f32 0.0, %v183
    %v185 = vpop.f32.mrf.mxu0
    %186 = vmatprep.mubr.f32.mxu0 0.0
    %187 = vmatmul.mubr.f32.gmra.mxu0 %v50
    %v188 = vpop.f32.mrf.mxu0
    %v189 = vadd.f32 0.0, %v188
    %v190 = vpop.f32.mrf.mxu0
    %191 = vmatprep.mubr.f32.mxu0 0.0
    %192 = vmatmul.mubr.f32.gmra.mxu0 %v51
    %v193 = vpop.f32.mrf.mxu0
    %v194 = vadd.f32 0.0, %v193
    %v195 = vpop.f32.mrf.mxu0
    %196 = vmatprep.mubr.f32.mxu0 0.0
    %197 = vmatmul.mubr.f32.gmra.mxu0 %v52
    %v198 = vpop.f32.mrf.mxu0
    %v199 = vadd.f32 0.0, %v198
    %v200 = vpop.f32.mrf.mxu0
    %201 = vmatprep.mubr.f32.mxu0 0.0
    %202 = vmatmul.mubr.f32.gmra.mxu0 %v53
    %v203 = vpop.f32.mrf.mxu0
    %v204 = vadd.f32 0.0, %v203
    %v205 = vpop.f32.mrf.mxu0
    %206 = vmatprep.mubr.f32.mxu0 0.0
    %207 = vmatmul.mubr.f32.gmra.mxu0 %v54
    %v208 = vpop.f32.mrf.mxu0
    %v209 = vadd.f32 0.0, %v208
    %v210 = vpop.f32.mrf.mxu0
    %211 = vmatprep.mubr.f32.mxu0 0.0
    %212 = vmatmul.mubr.f32.gmra.mxu0 %v55
    %v213 = vpop.f32.mrf.mxu0
    %v214 = vadd.f32 0.0, %v213
    %v215 = vpop.f32.mrf.mxu0
    %216 = vdwg.mxu0
    %v217 = vmul.f32 %v139, 0.7
    %v218 = vmul.f32 %v144, 0.7
    %v219 = vmul.f32 %v149, 0.7
    %v220 = vmul.f32 %v154, 0.7
    %v221 = vmul.f32 %v159, 0.7
    %v222 = vmul.f32 %v164, 0.7
    %v223 = vmul.f32 %v169, 0.7
    %v224 = vmul.f32 %v174, 0.7
    %v225 = vmul.f32 %v179, 0.7
    %v226 = vmul.f32 %v184, 0.7
    %v227 = vmul.f32 %v189, 0.7
    %v228 = vmul.f32 %v194, 0.7
    %v229 = vmul.f32 %v199, 0.7
    %v230 = vmul.f32 %v204, 0.7
    %v231 = vmul.f32 %v209, 0.7
    %v232 = vmul.f32 %v214, 0.7
    %233 = vst [vmem:[#allocation7] sm:$0xff] %v217
    %234 = vst [vmem:[#allocation7 + $0x8] sm:$0xff] %v218
    %235 = vst [vmem:[#allocation7 + $0x10] sm:$0xff] %v219
    %236 = vst [vmem:[#allocation7 + $0x18] sm:$0xff] %v220
    %237 = vst [vmem:[#allocation7 + $0x20] sm:$0xff] %v221
    %238 = vst [vmem:[#allocation7 + $0x28] sm:$0xff] %v222
    %239 = vst [vmem:[#allocation7 + $0x30] sm:$0xff] %v223
    %240 = vst [vmem:[#allocation7 + $0x38] sm:$0xff] %v224
    %241 = vst [vmem:[#allocation7 + $0x40] sm:$0xff] %v225
    %242 = vst [vmem:[#allocation7 + $0x48] sm:$0xff] %v226
    %243 = vst [vmem:[#allocation7 + $0x50] sm:$0xff] %v227
    %244 = vst [vmem:[#allocation7 + $0x58] sm:$0xff] %v228
    %245 = vst [vmem:[#allocation7 + $0x60] sm:$0xff] %v229
    %246 = vst [vmem:[#allocation7 + $0x68] sm:$0xff] %v230
    %247 = vst [vmem:[#allocation7 + $0x70] sm:$0xff] %v231
    %248 = vst [vmem:[#allocation7 + $0x78] sm:$0xff] %v232
    // Predicated region
    $region18: #{tpu_custom_call.1} parent=1 // pred_check
      _
    $region19: #{tpu_custom_call.1} parent=1 // pred_check_branch
      %250 = sbr.rel (0) target = $region21
    $region20: #{tpu_custom_call.1} parent=1 // pred_region
      %s252 = ssub.s32 2048, 2048
      %253 = vsyncadd [#allocation4], %s252
      %s254 = sshll.u32 [#allocation7], 4
      %s255 = int_to_ptr.vmem [resolvable:$true] %s254
      %260 = dma.vmem_to_hbm [thread:$0]  %s255, 2048, %s2, [#allocation4], 128, 128, 8
    $region21: #{tpu_custom_call.1} parent=1 // pred_fallthru
      _
    // Predicated region
    $region22: #{tpu_custom_call.1} parent=1 // pred_check
      _
    $region23: #{tpu_custom_call.1} parent=1 // pred_check_branch
      %262 = sbr.rel (0) target = $region25
    $region24: #{tpu_custom_call.1} parent=1 // pred_region
      %263 = dma.done [#allocation4], 2048
    $region25: #{tpu_custom_call.1} parent=1 // pred_fallthru
      _
    %264 = vsyncpa [#allocation3], 1
    %265 = vsyncpa [#allocation6], 1
    %266 = vsyncpa [#allocation4], 1

</llo_original>
